<compile_context>
chip_gen: v7x
topology: tpu7x:2x2x1
jax: 0.10.0
libtpu: 0.0.40
codegen_flags: <defaults>
</compile_context>

<pallas_src>
import math

import jax
import jax.numpy as jnp
from jax.experimental import pallas as pl
from jax.experimental.pallas import tpu as pltpu

HIDDEN = 64    # nn.Linear hidden width in the PyTorch module
HPAD = 128     # lane-padded hidden width (full vreg lane width)

_SPLIT_THRESHOLD = 256   # below this batch size a single tile wins (overhead-bound)


def _round_up(n, m):
    return ((n + m - 1) // m) * m


def _choose_tm(batch, tm):
    """Batch tile: multiple of 16 (bf16 sublane packing); for large batches cap
    it so the grid has >= 2 steps and can shard across v7x's two TensorCores."""
    if batch >= _SPLIT_THRESHOLD:
        tm = min(tm, _round_up(pl.cdiv(batch, 2), 16))
    return max(16, min(tm, _round_up(batch, 16)))


def _td3_actor_kernel(x_ref, w1_ref, b1_ref, w2_ref, b2_ref, w3_ref, b3_ref,
                      out_ref):
    # lin1 + ReLU  (cast x -> bf16 in-register; bf16 MXU matmul, f32 accumulate)
    x = x_ref[...].astype(jnp.bfloat16)
    h1 = jnp.dot(x, w1_ref[...], preferred_element_type=jnp.float32)
    h1 = jnp.maximum(h1 + b1_ref[...], 0.0)

    # lin2 + ReLU
    h2 = jnp.dot(h1.astype(jnp.bfloat16), w2_ref[...],
                 preferred_element_type=jnp.float32)
    h2 = jnp.maximum(h2 + b2_ref[...], 0.0)

    # lin3 + tanh
    y = jnp.dot(h2.astype(jnp.bfloat16), w3_ref[...],
                preferred_element_type=jnp.float32)
    y = jnp.tanh(y + b3_ref[...])
    out_ref[...] = y.astype(out_ref.dtype)


def td3_actor_forward(x, params, *, tm=1024, out_dtype=jnp.bfloat16):
    """Full actor forward in one pallas_call, batch-blocked with resident weights."""
    B, S = x.shape
    A = params["b3"].shape[-1]

    TM = _choose_tm(B, tm)
    grid = (pl.cdiv(B, TM),)                 # ragged last tile handled by Pallas

    resident = lambda i: (0, 0)              # weights/biases pinned across tiles

    out = pl.pallas_call(
        _td3_actor_kernel,
        out_shape=jax.ShapeDtypeStruct((B, A), out_dtype),
        grid=grid,
        in_specs=[
            pl.BlockSpec((TM, S), lambda i: (i, 0)),      # x tile (native dtype)
            pl.BlockSpec((S, HPAD), resident),            # W1
            pl.BlockSpec((1, HPAD), resident),            # b1
            pl.BlockSpec((HPAD, HPAD), resident),         # W2
            pl.BlockSpec((1, HPAD), resident),            # b2
            pl.BlockSpec((HPAD, A), resident),            # W3
            pl.BlockSpec((1, A), resident),               # b3
        ],
        out_specs=pl.BlockSpec((TM, A), lambda i: (i, 0)),
        compiler_params=pltpu.CompilerParams(
            dimension_semantics=("parallel",),            # megacore on v7x
        ),
    )(x, params["w1"], params["b1"], params["w2"], params["b2"],
      params["w3"], params["b3"])
    return out


def init_params(key, state_size, action_size):
    """nn.Linear-style init (uniform +/- 1/sqrt(fan_in)); weights stored (in, out),
    hidden width zero-padded to 128 lanes, matmul operands cast to bf16."""
    ks = jax.random.split(key, 6)

    def lin(kw, kb, fan_in, fan_out):
        bound = 1.0 / math.sqrt(fan_in)
        w = jax.random.uniform(kw, (fan_in, fan_out), jnp.float32, -bound, bound)
        b = jax.random.uniform(kb, (fan_out,), jnp.float32, -bound, bound)
        return w, b

    w1, b1 = lin(ks[0], ks[1], state_size, HIDDEN)
    w2, b2 = lin(ks[2], ks[3], HIDDEN, HIDDEN)
    w3, b3 = lin(ks[4], ks[5], HIDDEN, action_size)

    w1p = jnp.zeros((state_size, HPAD), jnp.float32).at[:, :HIDDEN].set(w1)
    b1p = jnp.zeros((1, HPAD), jnp.float32).at[:, :HIDDEN].set(b1)
    w2p = jnp.zeros((HPAD, HPAD), jnp.float32).at[:HIDDEN, :HIDDEN].set(w2)
    b2p = jnp.zeros((1, HPAD), jnp.float32).at[:, :HIDDEN].set(b2)
    w3p = jnp.zeros((HPAD, action_size), jnp.float32).at[:HIDDEN, :].set(w3)
    b3p = b3.reshape(1, action_size)

    params = {
        "w1": w1p.astype(jnp.bfloat16), "b1": b1p,
        "w2": w2p.astype(jnp.bfloat16), "b2": b2p,
        "w3": w3p.astype(jnp.bfloat16), "b3": b3p,
    }
    # unpadded f32 copies for a pure-f32 reference of the PyTorch module
    ref = {"w1": w1, "b1": b1, "w2": w2, "b2": b2, "w3": w3, "b3": b3}
    return params, ref


def td3_actor_ref_bf16(x, p):
    """Pure-JAX reference mirroring the kernel's dtype handling exactly."""
    h1 = jnp.maximum(
        jnp.dot(x.astype(jnp.bfloat16), p["w1"],
                preferred_element_type=jnp.float32) + p["b1"], 0.0)
    h2 = jnp.maximum(
        jnp.dot(h1.astype(jnp.bfloat16), p["w2"],
                preferred_element_type=jnp.float32) + p["b2"], 0.0)
    return jnp.tanh(
        jnp.dot(h2.astype(jnp.bfloat16), p["w3"],
                preferred_element_type=jnp.float32) + p["b3"])


def td3_actor_ref_f32(x, r):
    """Pure-f32 reference of the PyTorch TD3_actor forward (intended relu after lin2)."""
    h1 = jnp.maximum(x @ r["w1"] + r["b1"], 0.0)
    h2 = jnp.maximum(h1 @ r["w2"] + r["b2"], 0.0)
    return jnp.tanh(h2 @ r["w3"] + r["b3"])


if __name__ == "__main__":
    # B deliberately NOT a multiple of the test tile so the ragged-last-block
    # (masked write) path is exercised.
    B, STATE_SIZE, ACTION_SIZE = 72, 16, 8

    key = jax.random.PRNGKey(0)
    kx, kp = jax.random.split(key)
    x = jax.random.normal(kx, (B, STATE_SIZE), jnp.float32)
    params, ref_params = init_params(kp, STATE_SIZE, ACTION_SIZE)

    y_bf = td3_actor_ref_bf16(x, params)       # same dtype path as kernel (f32 out)
    y_f32 = td3_actor_ref_f32(x, ref_params)   # original f32 module math

    # Multi-tile path: tm=32 -> grid of 3 batch tiles, last one ragged (8 rows).
    y_multi = jax.block_until_ready(td3_actor_forward(x, params, tm=32))
    # Single-tile (default-tm) path.
    y_single = jax.block_until_ready(td3_actor_forward(x, params))

    for y in (y_multi, y_single):
        assert y.shape == (B, ACTION_SIZE)
        yf = y.astype(jnp.float32)
        assert jnp.all(jnp.isfinite(yf)), "non-finite output"
        assert jnp.allclose(yf, y_bf, atol=1e-2, rtol=1e-2), "mismatch vs bf16 reference"
        assert jnp.allclose(yf, y_f32, atol=5e-2, rtol=5e-2), "mismatch vs f32 reference"

    print("KERNEL_OK")
</pallas_src>

<mosaic_0001>
module attributes {stable_mosaic.version = 11 : i64} {
  func.func @_td3_actor_kernel(%arg0: i32, %arg1: memref<32x16xf32, #tpu.memory_space<vmem>>, %arg2: memref<16x128xbf16, #tpu.memory_space<vmem>>, %arg3: memref<1x128xf32, #tpu.memory_space<vmem>>, %arg4: memref<128x128xbf16, #tpu.memory_space<vmem>>, %arg5: memref<1x128xf32, #tpu.memory_space<vmem>>, %arg6: memref<128x8xbf16, #tpu.memory_space<vmem>>, %arg7: memref<1x8xf32, #tpu.memory_space<vmem>>, %arg8: memref<32x8xbf16, #tpu.memory_space<vmem>>) attributes {dimension_semantics = [#tpu.dimension_semantics<parallel>], iteration_bounds = array<i64: 3>, scalar_prefetch = 0 : i64, scratch_operands = 0 : i64, tpu.core_type = #tpu.core_type<tc>, window_params = [{transform_indices = @transform_0, window_bounds = array<i64: 32, 16>}, {pipeline_mode = #tpu.pipeline_mode<synchronous>, transform_indices = @transform_1, window_bounds = array<i64: 16, 128>}, {pipeline_mode = #tpu.pipeline_mode<synchronous>, transform_indices = @transform_2, window_bounds = array<i64: 1, 128>}, {pipeline_mode = #tpu.pipeline_mode<synchronous>, transform_indices = @transform_3, window_bounds = array<i64: 128, 128>}, {pipeline_mode = #tpu.pipeline_mode<synchronous>, transform_indices = @transform_4, window_bounds = array<i64: 1, 128>}, {pipeline_mode = #tpu.pipeline_mode<synchronous>, transform_indices = @transform_5, window_bounds = array<i64: 128, 8>}, {pipeline_mode = #tpu.pipeline_mode<synchronous>, transform_indices = @transform_6, window_bounds = array<i64: 1, 8>}, {transform_indices = @transform_7, window_bounds = array<i64: 32, 8>}]} {
    %c0 = arith.constant 0 : index
    %c0_0 = arith.constant 0 : index
    %0 = vector.load %arg1[%c0, %c0_0] : memref<32x16xf32, #tpu.memory_space<vmem>>, vector<32x16xf32>
    %1 = arith.truncf %0 : vector<32x16xf32> to vector<32x16xbf16>
    %c0_1 = arith.constant 0 : index
    %c0_2 = arith.constant 0 : index
    %2 = vector.load %arg2[%c0_1, %c0_2] : memref<16x128xbf16, #tpu.memory_space<vmem>>, vector<16x128xbf16>
    %cst = arith.constant dense<0.000000e+00> : vector<32x128xf32>
    %3 = tpu.matmul %1, %2, %cst {dimension_numbers = #tpu.dot_dimension_numbers<[1], [0], [0], [1], [0, 0, 1, 1], [], []>} : vector<32x16xbf16>, vector<16x128xbf16>, vector<32x128xf32> -> vector<32x128xf32>
    %c0_3 = arith.constant 0 : index
    %c0_4 = arith.constant 0 : index
    %4 = vector.load %arg3[%c0_3, %c0_4] : memref<1x128xf32, #tpu.memory_space<vmem>>, vector<1x128xf32>
    %5 = vector.broadcast %4 : vector<1x128xf32> to vector<32x128xf32>
    %6 = arith.addf %3, %5 : vector<32x128xf32>
    %cst_5 = arith.constant 0.000000e+00 : f32
    %7 = vector.broadcast %cst_5 : f32 to vector<32x128xf32>
    %8 = arith.maximumf %6, %7 : vector<32x128xf32>
    %9 = arith.truncf %8 : vector<32x128xf32> to vector<32x128xbf16>
    %c0_6 = arith.constant 0 : index
    %c0_7 = arith.constant 0 : index
    %10 = vector.load %arg4[%c0_6, %c0_7] : memref<128x128xbf16, #tpu.memory_space<vmem>>, vector<128x128xbf16>
    %cst_8 = arith.constant dense<0.000000e+00> : vector<32x128xf32>
    %11 = tpu.matmul %9, %10, %cst_8 {dimension_numbers = #tpu.dot_dimension_numbers<[1], [0], [0], [1], [0, 0, 1, 1], [], []>} : vector<32x128xbf16>, vector<128x128xbf16>, vector<32x128xf32> -> vector<32x128xf32>
    %c0_9 = arith.constant 0 : index
    %c0_10 = arith.constant 0 : index
    %12 = vector.load %arg5[%c0_9, %c0_10] : memref<1x128xf32, #tpu.memory_space<vmem>>, vector<1x128xf32>
    %13 = vector.broadcast %12 : vector<1x128xf32> to vector<32x128xf32>
    %14 = arith.addf %11, %13 : vector<32x128xf32>
    %cst_11 = arith.constant 0.000000e+00 : f32
    %15 = vector.broadcast %cst_11 : f32 to vector<32x128xf32>
    %16 = arith.maximumf %14, %15 : vector<32x128xf32>
    %17 = arith.truncf %16 : vector<32x128xf32> to vector<32x128xbf16>
    %c0_12 = arith.constant 0 : index
    %c0_13 = arith.constant 0 : index
    %18 = vector.load %arg6[%c0_12, %c0_13] : memref<128x8xbf16, #tpu.memory_space<vmem>>, vector<128x8xbf16>
    %cst_14 = arith.constant dense<0.000000e+00> : vector<32x8xf32>
    %19 = tpu.matmul %17, %18, %cst_14 {dimension_numbers = #tpu.dot_dimension_numbers<[1], [0], [0], [1], [0, 0, 1, 1], [], []>} : vector<32x128xbf16>, vector<128x8xbf16>, vector<32x8xf32> -> vector<32x8xf32>
    %c0_15 = arith.constant 0 : index
    %c0_16 = arith.constant 0 : index
    %20 = vector.load %arg7[%c0_15, %c0_16] : memref<1x8xf32, #tpu.memory_space<vmem>>, vector<1x8xf32>
    %21 = vector.broadcast %20 : vector<1x8xf32> to vector<32x8xf32>
    %22 = arith.addf %19, %21 : vector<32x8xf32>
    %23 = math.tanh %22 : vector<32x8xf32>
    %24 = arith.truncf %23 : vector<32x8xf32> to vector<32x8xbf16>
    %c0_17 = arith.constant 0 : index
    %c0_18 = arith.constant 0 : index
    %25 = vector.load %arg8[%c0_17, %c0_18] : memref<32x8xbf16, #tpu.memory_space<vmem>>, vector<32x8xbf16>
    tpu.vector_store %arg8[%c0_17, %c0_18], %24 {strides = array<i32>} : memref<32x8xbf16, #tpu.memory_space<vmem>>, vector<32x8xbf16>,
    return
  }
  func.func @transform_0(%arg0: i32) -> (i32, i32) {
    %c0_i32 = arith.constant 0 : i32
    %c0_i32_0 = arith.constant 0 : i32
    return %arg0, %c0_i32 : i32, i32
  }
  func.func @transform_1(%arg0: i32) -> (i32, i32) {
    %c0_i32 = arith.constant 0 : i32
    %c0_i32_0 = arith.constant 0 : i32
    %c0_i32_1 = arith.constant 0 : i32
    return %c0_i32, %c0_i32_0 : i32, i32
  }
  func.func @transform_2(%arg0: i32) -> (i32, i32) {
    %c0_i32 = arith.constant 0 : i32
    %c0_i32_0 = arith.constant 0 : i32
    %c0_i32_1 = arith.constant 0 : i32
    return %c0_i32, %c0_i32_0 : i32, i32
  }
  func.func @transform_3(%arg0: i32) -> (i32, i32) {
    %c0_i32 = arith.constant 0 : i32
    %c0_i32_0 = arith.constant 0 : i32
    %c0_i32_1 = arith.constant 0 : i32
    return %c0_i32, %c0_i32_0 : i32, i32
  }
  func.func @transform_4(%arg0: i32) -> (i32, i32) {
    %c0_i32 = arith.constant 0 : i32
    %c0_i32_0 = arith.constant 0 : i32
    %c0_i32_1 = arith.constant 0 : i32
    return %c0_i32, %c0_i32_0 : i32, i32
  }
  func.func @transform_5(%arg0: i32) -> (i32, i32) {
    %c0_i32 = arith.constant 0 : i32
    %c0_i32_0 = arith.constant 0 : i32
    %c0_i32_1 = arith.constant 0 : i32
    return %c0_i32, %c0_i32_0 : i32, i32
  }
  func.func @transform_6(%arg0: i32) -> (i32, i32) {
    %c0_i32 = arith.constant 0 : i32
    %c0_i32_0 = arith.constant 0 : i32
    %c0_i32_1 = arith.constant 0 : i32
    return %c0_i32, %c0_i32_0 : i32, i32
  }
  func.func @transform_7(%arg0: i32) -> (i32, i32) {
    %c0_i32 = arith.constant 0 : i32
    %c0_i32_0 = arith.constant 0 : i32
    return %arg0, %c0_i32 : i32, i32
  }
}

</mosaic_0001>

<llo_original>
// kernel: tpu_custom_call.1
$region0: #{tpu_custom_call.1}
  #allocation0 [shape = 'u32[]', space=smem, size = 0x4, offset = 0x4, fixed_abs, tag = 'smem constant byte address 0x4 - core index']
  #allocation1 [shape = 'u32[144,128]{1,0:T(1,128)}', space=vmem, size = 0x12000, scoped, tag = 'internal scratch']
  %s0 = inlined_call_operand.vmem [shape: f32[72,16], index: 0, kind: input, shape index: {}]
  %s1 = inlined_call_operand.vmem [shape: bf16[16,128], index: 1, kind: input, shape index: {}]
  %s2 = inlined_call_operand.vmem [shape: f32[1,128], index: 2, kind: input, shape index: {}]
  %s3 = inlined_call_operand.vmem [shape: bf16[128,128], index: 3, kind: input, shape index: {}]
  %s4 = inlined_call_operand.vmem [shape: f32[1,128], index: 4, kind: input, shape index: {}]
  %s5 = inlined_call_operand.vmem [shape: bf16[128,8], index: 5, kind: input, shape index: {}]
  %s6 = inlined_call_operand.vmem [shape: f32[1,8], index: 6, kind: input, shape index: {}]
  %s7 = inlined_call_operand.vmem [shape: bf16[72,8], index: 7, kind: output, shape index: {}]
  %s8 = sld [smem:[#allocation0]]
  $region105: #{tpu_custom_call.1} parent=0
    _
  %s10 = ssub.s32 1, %s8
  %s11 = scalar_select 0, %s10, %s8
  $region1: #{tpu_custom_call.1} parent=0
    #allocation2 [shape = 'u8[16384]{0}', space=vmem, size = 0x4000, scoped, tag = 'output window, operand 0']
    loop: start=0, step=1, limit=5
    $region2: #{tpu_custom_call.1} parent=1 // loop_pre_header
      _
    $region3: #{tpu_custom_call.1} parent=1 // loop_header
      %s13 = sphi 0, %s17
      %p14 = scmp.ge.s32.totalorder %s13, 5
      %s23 = sphi 0, %s25
      %s26 = sphi 0, %s23
      %s27 = sphi 0, %s26
      %s43 = sphi 0, %s27
      %s47 = sphi 0, %s47
      %s49 = sphi 0, %s47
      %s50 = sphi 0, %s49
      %s64 = sphi 0, %s50
      %s68 = sphi 0, %s68
      %s70 = sphi 0, %s68
      %s71 = sphi 0, %s70
      %s85 = sphi 0, %s71
      %s89 = sphi 0, %s89
      %s91 = sphi 0, %s89
      %s92 = sphi 0, %s91
      %s106 = sphi 0, %s92
      %s110 = sphi 0, %s110
      %s112 = sphi 0, %s110
      %s113 = sphi 0, %s112
      %s127 = sphi 0, %s113
      %s131 = sphi 0, %s131
      %s133 = sphi 0, %s131
      %s134 = sphi 0, %s133
      %s148 = sphi 0, %s134
      %s152 = sphi 0, %s152
      %s154 = sphi 0, %s152
      %s155 = sphi 0, %s154
      %s169 = sphi 0, %s155
      %s175 = sphi 0, %s177
      %s178 = sphi 0, %s175
      %s179 = sphi 0, %s178
      %s195 = sphi 0, %s179
    $region4: #{tpu_custom_call.1} parent=1 // loop_header_branch
      %16 = sbr.rel (%p14) target = $region8
    $region5: #{tpu_custom_call.1} parent=1 // loop_body
      %s18 = ssub.s32 %s13, 1
      %s19 = ssub.s32 %s13, 2
      %s20 = sadd.s32 %s13, 1
      %s21 = ssub.s32 %s13, %s20
      %p22 = scmp.eq.s32.totalorder %s21, 0
      %s24 = sadd.s32 %s23, 1
      %s25 = scalar_select %p22, %s23, %s24
      %p28 = pneg %p22
      %p29 = scmp.eq.s32.totalorder %s13, 2
      %p30 = por %p28, %p29
      %p31 = scmp.ne.s32.totalorder %s23, %s26
      %p32 = scmp.eq.s32.totalorder %s13, 0
      %p33 = por %p31, %p32
      %p34 = scmp.ne.s32.totalorder %s23, %s26
      %p35 = scmp.eq.s32.totalorder %s18, 2
      %p36 = por %p34, %p35
      %p37 = scmp.ne.s32.totalorder %s26, %s27
      %p38 = scmp.eq.s32.totalorder %s18, 0
      %p39 = por %p37, %p38
      %p40 = scmp.ne.s32.totalorder %s26, %s27
      %p41 = scmp.eq.s32.totalorder %s19, 2
      %p42 = por %p40, %p41
      %p44 = scmp.ne.s32.totalorder %s27, %s43
      %p45 = scmp.eq.s32.totalorder %s19, 0
      %p46 = por %p44, %p45
      %s48 = sadd.s32 %s47, 1
      %p51 = scmp.eq.s32.totalorder %s13, 2
      %p52 = scmp.ne.s32.totalorder %s47, %s49
      %p53 = scmp.eq.s32.totalorder %s13, 0
      %p54 = por %p52, %p53
      %p55 = scmp.ne.s32.totalorder %s47, %s49
      %p56 = scmp.eq.s32.totalorder %s18, 2
      %p57 = por %p55, %p56
      %p58 = scmp.ne.s32.totalorder %s49, %s50
      %p59 = scmp.eq.s32.totalorder %s18, 0
      %p60 = por %p58, %p59
      %p61 = scmp.ne.s32.totalorder %s49, %s50
      %p62 = scmp.eq.s32.totalorder %s19, 2
      %p63 = por %p61, %p62
      %p65 = scmp.ne.s32.totalorder %s50, %s64
      %p66 = scmp.eq.s32.totalorder %s19, 0
      %p67 = por %p65, %p66
      %s69 = sadd.s32 %s68, 1
      %p72 = scmp.eq.s32.totalorder %s13, 2
      %p73 = scmp.ne.s32.totalorder %s68, %s70
      %p74 = scmp.eq.s32.totalorder %s13, 0
      %p75 = por %p73, %p74
      %p76 = scmp.ne.s32.totalorder %s68, %s70
      %p77 = scmp.eq.s32.totalorder %s18, 2
      %p78 = por %p76, %p77
      %p79 = scmp.ne.s32.totalorder %s70, %s71
      %p80 = scmp.eq.s32.totalorder %s18, 0
      %p81 = por %p79, %p80
      %p82 = scmp.ne.s32.totalorder %s70, %s71
      %p83 = scmp.eq.s32.totalorder %s19, 2
      %p84 = por %p82, %p83
      %p86 = scmp.ne.s32.totalorder %s71, %s85
      %p87 = scmp.eq.s32.totalorder %s19, 0
      %p88 = por %p86, %p87
      %s90 = sadd.s32 %s89, 1
      %p93 = scmp.eq.s32.totalorder %s13, 2
      %p94 = scmp.ne.s32.totalorder %s89, %s91
      %p95 = scmp.eq.s32.totalorder %s13, 0
      %p96 = por %p94, %p95
      %p97 = scmp.ne.s32.totalorder %s89, %s91
      %p98 = scmp.eq.s32.totalorder %s18, 2
      %p99 = por %p97, %p98
      %p100 = scmp.ne.s32.totalorder %s91, %s92
      %p101 = scmp.eq.s32.totalorder %s18, 0
      %p102 = por %p100, %p101
      %p103 = scmp.ne.s32.totalorder %s91, %s92
      %p104 = scmp.eq.s32.totalorder %s19, 2
      %p105 = por %p103, %p104
      %p107 = scmp.ne.s32.totalorder %s92, %s106
      %p108 = scmp.eq.s32.totalorder %s19, 0
      %p109 = por %p107, %p108
      %s111 = sadd.s32 %s110, 1
      %p114 = scmp.eq.s32.totalorder %s13, 2
      %p115 = scmp.ne.s32.totalorder %s110, %s112
      %p116 = scmp.eq.s32.totalorder %s13, 0
      %p117 = por %p115, %p116
      %p118 = scmp.ne.s32.totalorder %s110, %s112
      %p119 = scmp.eq.s32.totalorder %s18, 2
      %p120 = por %p118, %p119
      %p121 = scmp.ne.s32.totalorder %s112, %s113
      %p122 = scmp.eq.s32.totalorder %s18, 0
      %p123 = por %p121, %p122
      %p124 = scmp.ne.s32.totalorder %s112, %s113
      %p125 = scmp.eq.s32.totalorder %s19, 2
      %p126 = por %p124, %p125
      %p128 = scmp.ne.s32.totalorder %s113, %s127
      %p129 = scmp.eq.s32.totalorder %s19, 0
      %p130 = por %p128, %p129
      %s132 = sadd.s32 %s131, 1
      %p135 = scmp.eq.s32.totalorder %s13, 2
      %p136 = scmp.ne.s32.totalorder %s131, %s133
      %p137 = scmp.eq.s32.totalorder %s13, 0
      %p138 = por %p136, %p137
      %p139 = scmp.ne.s32.totalorder %s131, %s133
      %p140 = scmp.eq.s32.totalorder %s18, 2
      %p141 = por %p139, %p140
      %p142 = scmp.ne.s32.totalorder %s133, %s134
      %p143 = scmp.eq.s32.totalorder %s18, 0
      %p144 = por %p142, %p143
      %p145 = scmp.ne.s32.totalorder %s133, %s134
      %p146 = scmp.eq.s32.totalorder %s19, 2
      %p147 = por %p145, %p146
      %p149 = scmp.ne.s32.totalorder %s134, %s148
      %p150 = scmp.eq.s32.totalorder %s19, 0
      %p151 = por %p149, %p150
      %s153 = sadd.s32 %s152, 1
      %p156 = scmp.eq.s32.totalorder %s13, 2
      %p157 = scmp.ne.s32.totalorder %s152, %s154
      %p158 = scmp.eq.s32.totalorder %s13, 0
      %p159 = por %p157, %p158
      %p160 = scmp.ne.s32.totalorder %s152, %s154
      %p161 = scmp.eq.s32.totalorder %s18, 2
      %p162 = por %p160, %p161
      %p163 = scmp.ne.s32.totalorder %s154, %s155
      %p164 = scmp.eq.s32.totalorder %s18, 0
      %p165 = por %p163, %p164
      %p166 = scmp.ne.s32.totalorder %s154, %s155
      %p167 = scmp.eq.s32.totalorder %s19, 2
      %p168 = por %p166, %p167
      %p170 = scmp.ne.s32.totalorder %s155, %s169
      %p171 = scmp.eq.s32.totalorder %s19, 0
      %p172 = por %p170, %p171
      %s173 = ssub.s32 %s13, %s20
      %p174 = scmp.eq.s32.totalorder %s173, 0
      %s176 = sadd.s32 %s175, 1
      %s177 = scalar_select %p174, %s175, %s176
      %p180 = pneg %p174
      %p181 = scmp.eq.s32.totalorder %s13, 2
      %p182 = por %p180, %p181
      %p183 = scmp.ne.s32.totalorder %s175, %s178
      %p184 = scmp.eq.s32.totalorder %s13, 0
      %p185 = por %p183, %p184
      %p186 = scmp.ne.s32.totalorder %s175, %s178
      %p187 = scmp.eq.s32.totalorder %s18, 2
      %p188 = por %p186, %p187
      %p189 = scmp.ne.s32.totalorder %s178, %s179
      %p190 = scmp.eq.s32.totalorder %s18, 0
      %p191 = por %p189, %p190
      %p192 = scmp.ne.s32.totalorder %s178, %s179
      %p193 = scmp.eq.s32.totalorder %s19, 2
      %p194 = por %p192, %p193
      %p196 = scmp.ne.s32.totalorder %s179, %s195
      %p197 = scmp.eq.s32.totalorder %s19, 0
      %p198 = por %p196, %p197
      %p199 = scmp.le.s32.totalorder 1, %s13
      %p200 = scmp.lt.s32.totalorder %s13, 4
      %p201 = pnand %p199, %p200
      %p202 = pneg %p201
      // Predicated region
      $region9: #{tpu_custom_call.1} parent=5 // pred_check
        _
      $region10: #{tpu_custom_call.1} parent=5 // pred_check_branch
        %204 = sbr.rel (%p201) target = $region12
      $region11: #{tpu_custom_call.1} parent=5 // pred_region
        %s205 = ssub.s32 %s13, 1
        // Predicated region
        $region13: #{tpu_custom_call.1} parent=11 // pred_check
          %p206 = pneg %p60
        $region14: #{tpu_custom_call.1} parent=11 // pred_check_branch
          %208 = sbr.rel (%p206) target = $region16
        $region15: #{tpu_custom_call.1} parent=11 // pred_region
          _
        $region16: #{tpu_custom_call.1} parent=11 // pred_fallthru
          _
        // Predicated region
        $region17: #{tpu_custom_call.1} parent=11 // pred_check
          %p209 = pneg %p81
        $region18: #{tpu_custom_call.1} parent=11 // pred_check_branch
          %211 = sbr.rel (%p209) target = $region20
        $region19: #{tpu_custom_call.1} parent=11 // pred_region
          _
        $region20: #{tpu_custom_call.1} parent=11 // pred_fallthru
          _
        // Predicated region
        $region21: #{tpu_custom_call.1} parent=11 // pred_check
          %p212 = pneg %p102
        $region22: #{tpu_custom_call.1} parent=11 // pred_check_branch
          %214 = sbr.rel (%p212) target = $region24
        $region23: #{tpu_custom_call.1} parent=11 // pred_region
          _
        $region24: #{tpu_custom_call.1} parent=11 // pred_fallthru
          _
        // Predicated region
        $region25: #{tpu_custom_call.1} parent=11 // pred_check
          %p215 = pneg %p123
        $region26: #{tpu_custom_call.1} parent=11 // pred_check_branch
          %217 = sbr.rel (%p215) target = $region28
        $region27: #{tpu_custom_call.1} parent=11 // pred_region
          _
        $region28: #{tpu_custom_call.1} parent=11 // pred_fallthru
          _
        // Predicated region
        $region29: #{tpu_custom_call.1} parent=11 // pred_check
          %p218 = pneg %p144
        $region30: #{tpu_custom_call.1} parent=11 // pred_check_branch
          %220 = sbr.rel (%p218) target = $region32
        $region31: #{tpu_custom_call.1} parent=11 // pred_region
          _
        $region32: #{tpu_custom_call.1} parent=11 // pred_fallthru
          _
        // Predicated region
        $region33: #{tpu_custom_call.1} parent=11 // pred_check
          %p221 = pneg %p165
        $region34: #{tpu_custom_call.1} parent=11 // pred_check_branch
          %223 = sbr.rel (%p221) target = $region36
        $region35: #{tpu_custom_call.1} parent=11 // pred_region
          _
        $region36: #{tpu_custom_call.1} parent=11 // pred_fallthru
          _
      $region12: #{tpu_custom_call.1} parent=5 // pred_fallthru
        _
      %p224 = scmp.lt.s32.totalorder %s13, 3
      // Predicated region
      $region37: #{tpu_custom_call.1} parent=5 // pred_check
        %p225 = pneg %p224
      $region38: #{tpu_custom_call.1} parent=5 // pred_check_branch
        %227 = sbr.rel (%p225) target = $region40
      $region39: #{tpu_custom_call.1} parent=5 // pred_region
        // Predicated region
        $region41: #{tpu_custom_call.1} parent=39 // pred_check
          %p228 = pneg %p33
        $region42: #{tpu_custom_call.1} parent=39 // pred_check_branch
          %230 = sbr.rel (%p228) target = $region44
        $region43: #{tpu_custom_call.1} parent=39 // pred_region
          %s231 = smul.u32 4, %s13
          %s232 = ssub.s32 9, %s231
          %p233 = scmp.lt.s32.totalorder %s232, 4
          %s234 = scalar_select %p233, %s232, 4
          %s235 = smul.u32 128, %s234
          %p236 = scmp.lt.s32.totalorder %s231, 8
          %s237 = scalar_select %p236, %s231, 8
          %s238 = smul.addr %s237, 8
          %s239 = scalar_lea.vmem %s0, %s238
          %s240 = smul.u32 4, %s13
          %s241 = ssub.s32 9, %s240
          %p242 = scmp.lt.s32.totalorder %s241, 4
          %s243 = scalar_select %p242, %s241, 4
          %s244 = smul.u32 128, %s243
        $region44: #{tpu_custom_call.1} parent=39 // pred_fallthru
          _
      $region40: #{tpu_custom_call.1} parent=5 // pred_fallthru
        _
      %p245 = scmp.le.s32.totalorder 1, %s13
      %p246 = scmp.lt.s32.totalorder %s13, 4
      %p247 = pnand %p245, %p246
      %p248 = pneg %p247
      // Predicated region
      $region45: #{tpu_custom_call.1} parent=5 // pred_check
        _
      $region46: #{tpu_custom_call.1} parent=5 // pred_check_branch
        %250 = sbr.rel (%p247) target = $region48
      $region47: #{tpu_custom_call.1} parent=5 // pred_region
        %s251 = ssub.s32 %s13, 1
        %s252 = smul.u32 4, %s18
        %s253 = ssub.s32 9, %s252
        %p254 = scmp.lt.s32.totalorder %s253, 4
        %s255 = scalar_select %p254, %s253, 4
        %s256 = smul.u32 128, %s255
        %p257 = scmp.lt.s32.totalorder %s252, 8
        %s258 = scalar_select %p257, %s252, 8
        %s259 = smul.addr %s258, 8
        %s260 = scalar_lea.vmem %s0, %s259
        %p261 = pneg %p39
        %p262 = pneg %p36
        %p263 = pneg %p60
        %p264 = pneg %p57
        %p265 = pneg %p81
        %p266 = pneg %p78
        %p267 = pneg %p102
        %p268 = pneg %p99
        %p269 = pneg %p123
        %p270 = pneg %p120
        %p271 = pneg %p144
        %p272 = pneg %p141
        %p273 = pneg %p165
        %p274 = pneg %p162
        %p275 = pneg %p191
        %p276 = pneg %p188
        %s277 = sand.u32 %s178, 1
        %s278 = sand.u32 %s178, 1
        %s279 = smul.addr %s278, 16
        %s280 = scalar_lea.vmem [#allocation2], %s279
        %s281 = smul.u32 4, %s18
        %s282 = ssub.s32 9, %s281
        %p283 = scmp.lt.s32.totalorder %s282, 4
        %s284 = scalar_select %p283, %s282, 4
        %s285 = smul.u32 128, %s284
        %p286 = scmp.lt.s32.totalorder %s281, 8
        %s287 = scalar_select %p286, %s281, 8
        %s288 = smul.addr %s287, 8
        %s289 = scalar_lea.vmem %s0, %s288
        %s290 = smul.u32 4, %s18
        %s291 = ssub.s32 9, %s290
        %p292 = scmp.lt.s32.totalorder %s291, 4
        %s293 = scalar_select %p292, %s291, 4
        %s294 = smul.u32 128, %s293
        %s295 = smul.u32 4, %s18
        %s296 = ssub.s32 9, %s295
        %p297 = scmp.lt.s32.totalorder %s296, 4
        %s298 = scalar_select %p297, %s296, 4
        %s299 = smul.u32 64, %s298
        %v301 = vld [vmem:[%s289] sm:$0xff]
        %v302 = vld [vmem:[%s289 + $0x8] sm:$0xff]
        %v303 = vld [vmem:[%s289 + $0x10] sm:$0xff]
        %v304 = vld [vmem:[%s289 + $0x18] sm:$0xff]
        %v305 = vpack.c.bf16 %v302, %v301
        %v306 = vpack.c.bf16 %v304, %v303
        %v307 = vld [vmem:[%s1] sm:$0xf]
        %v308 = vld [vmem:[%s1 + $0x4] sm:$0xf]
        %v309 = vld [vmem:[%s2] sm:$0x1]
        %v311 = vlaneseq
        %v312 = vshrl.u32 %v311, 7
        %v313 = vsub.s32 0, %v312
        %v314 = vrot.slane %v309, %v313
        %v318 = vunpack.c.l.b16 %v307
        %v319 = vunpack.c.l.b16 %v308
        %v320 = vpack.c.b16 %v319, %v318
        %vm322 = vcmask 130048
        %v324 = vsel %vm322, %v305, 0
        %v327 = vsel %vm322, %v306, 0
        %329 = vmatprep.subr.bf16.mxu0 0
        %330 = vmatpush1.bf16.msra.mxu0 %v320
        %331 = vmatprep.subr.bf16.mxu0 0
        %332 = vmatpush1.bf16.msra.mxu0 0
        %333 = vmatprep.subr.bf16.mxu0 0
        %334 = vmatpush1.bf16.msra.mxu0 0
        %335 = vmatprep.subr.bf16.mxu0 0
        %336 = vmatpush1.bf16.msra.mxu0 0
        %337 = vmatprep.subr.bf16.mxu0 0
        %338 = vmatpush1.bf16.msra.mxu0 0
        %339 = vmatprep.subr.bf16.mxu0 0
        %340 = vmatpush1.bf16.msra.mxu0 0
        %341 = vmatprep.subr.bf16.mxu0 0
        %342 = vmatpush1.bf16.msra.mxu0 0
        %343 = vmatprep.subr.bf16.mxu0 0
        %344 = vmatpush1.bf16.msra.mxu0 0
        %345 = vmatprep.subr.bf16.mxu0 0
        %346 = vmatpush1.bf16.msra.mxu0 0
        %347 = vmatprep.subr.bf16.mxu0 0
        %348 = vmatpush1.bf16.msra.mxu0 0
        %349 = vmatprep.subr.bf16.mxu0 0
        %350 = vmatpush1.bf16.msra.mxu0 0
        %351 = vmatprep.subr.bf16.mxu0 0
        %352 = vmatpush1.bf16.msra.mxu0 0
        %353 = vmatprep.subr.bf16.mxu0 0
        %354 = vmatpush1.bf16.msra.mxu0 0
        %355 = vmatprep.subr.bf16.mxu0 0
        %356 = vmatpush1.bf16.msra.mxu0 0
        %357 = vmatprep.subr.bf16.mxu0 0
        %358 = vmatpush1.bf16.msra.mxu0 0
        %359 = vmatprep.subr.bf16.mxu0 0
        %360 = vmatpush1.bf16.msra.mxu0 0
        %361 = vmatprep.mubr.bf16.mxu0 0
        %362 = vmatmul.mubr.bf16.gmra.mrb[0].mxu0 %v324
        %v363 = vpop.f32.mrb[0].mxu0
        %v364 = vadd.f32 %v314, %v363
        %v365 = vpop.f32.mrb[0].mxu0
        %v366 = vpop.f32.mrb[0].mxu0
        %v367 = vadd.f32 %v314, %v366
        %v368 = vpop.f32.mrb[0].mxu0
        %369 = vmatprep.mubr.bf16.mxu0 0
        %370 = vmatmul.mubr.bf16.gmra.mrb[0].mxu0 %v327
        %v371 = vpop.f32.mrb[0].mxu0
        %v372 = vadd.f32 %v314, %v371
        %v373 = vpop.f32.mrb[0].mxu0
        %v374 = vpop.f32.mrb[0].mxu0
        %v375 = vadd.f32 %v314, %v374
        %v376 = vpop.f32.mrb[0].mxu0
        %377 = vdwg.mxu0
        %v378 = vmax.f32 %v364, 0.0
        %v379 = vmax.f32 %v367, 0.0
        %v380 = vmax.f32 %v372, 0.0
        %v381 = vmax.f32 %v375, 0.0
        %v382 = vpack.c.bf16 %v379, %v378
        %v383 = vpack.c.bf16 %v381, %v380
        %v384 = vld [vmem:[%s3] sm:$0xf]
        %v385 = vld [vmem:[%s3 + $0x4] sm:$0xf]
        %v386 = vld [vmem:[%s3 + $0x8] sm:$0xf]
        %v387 = vld [vmem:[%s3 + $0xc] sm:$0xf]
        %v388 = vld [vmem:[%s3 + $0x10] sm:$0xf]
        %v389 = vld [vmem:[%s3 + $0x14] sm:$0xf]
        %v390 = vld [vmem:[%s3 + $0x18] sm:$0xf]
        %v391 = vld [vmem:[%s3 + $0x1c] sm:$0xf]
        %v392 = vld [vmem:[%s3 + $0x20] sm:$0xf]
        %v393 = vld [vmem:[%s3 + $0x24] sm:$0xf]
        %v394 = vld [vmem:[%s3 + $0x28] sm:$0xf]
        %v395 = vld [vmem:[%s3 + $0x2c] sm:$0xf]
        %v396 = vld [vmem:[%s3 + $0x30] sm:$0xf]
        %v397 = vld [vmem:[%s3 + $0x34] sm:$0xf]
        %v398 = vld [vmem:[%s3 + $0x38] sm:$0xf]
        %v399 = vld [vmem:[%s3 + $0x3c] sm:$0xf]
        %v400 = vld [vmem:[%s4] sm:$0x1]
        %v402 = vlaneseq
        %v403 = vshrl.u32 %v402, 7
        %v404 = vsub.s32 0, %v403
        %v405 = vrot.slane %v400, %v404
        %v423 = vunpack.c.l.b16 %v384
        %v424 = vunpack.c.l.b16 %v385
        %v425 = vunpack.c.l.b16 %v386
        %v426 = vunpack.c.l.b16 %v387
        %v427 = vunpack.c.l.b16 %v388
        %v428 = vunpack.c.l.b16 %v389
        %v429 = vunpack.c.l.b16 %v390
        %v430 = vunpack.c.l.b16 %v391
        %v431 = vunpack.c.l.b16 %v392
        %v432 = vunpack.c.l.b16 %v393
        %v433 = vunpack.c.l.b16 %v394
        %v434 = vunpack.c.l.b16 %v395
        %v435 = vunpack.c.l.b16 %v396
        %v436 = vunpack.c.l.b16 %v397
        %v437 = vunpack.c.l.b16 %v398
        %v438 = vunpack.c.l.b16 %v399
        %v439 = vpack.c.b16 %v424, %v423
        %v440 = vpack.c.b16 %v426, %v425
        %v441 = vpack.c.b16 %v428, %v427
        %v442 = vpack.c.b16 %v430, %v429
        %v443 = vpack.c.b16 %v432, %v431
        %v444 = vpack.c.b16 %v434, %v433
        %v445 = vpack.c.b16 %v436, %v435
        %v446 = vpack.c.b16 %v438, %v437
        %455 = vmatprep.subr.bf16.mxu0 0
        %456 = vmatpush1.bf16.msra.mxu0 %v439
        %457 = vmatprep.subr.bf16.mxu0 0
        %458 = vmatpush1.bf16.msra.mxu0 %v440
        %459 = vmatprep.subr.bf16.mxu0 0
        %460 = vmatpush1.bf16.msra.mxu0 %v441
        %461 = vmatprep.subr.bf16.mxu0 0
        %462 = vmatpush1.bf16.msra.mxu0 %v442
        %463 = vmatprep.subr.bf16.mxu0 0
        %464 = vmatpush1.bf16.msra.mxu0 %v443
        %465 = vmatprep.subr.bf16.mxu0 0
        %466 = vmatpush1.bf16.msra.mxu0 %v444
        %467 = vmatprep.subr.bf16.mxu0 0
        %468 = vmatpush1.bf16.msra.mxu0 %v445
        %469 = vmatprep.subr.bf16.mxu0 0
        %470 = vmatpush1.bf16.msra.mxu0 %v446
        %471 = vmatprep.subr.bf16.mxu0 0
        %472 = vmatpush1.bf16.msra.mxu0 0
        %473 = vmatprep.subr.bf16.mxu0 0
        %474 = vmatpush1.bf16.msra.mxu0 0
        %475 = vmatprep.subr.bf16.mxu0 0
        %476 = vmatpush1.bf16.msra.mxu0 0
        %477 = vmatprep.subr.bf16.mxu0 0
        %478 = vmatpush1.bf16.msra.mxu0 0
        %479 = vmatprep.subr.bf16.mxu0 0
        %480 = vmatpush1.bf16.msra.mxu0 0
        %481 = vmatprep.subr.bf16.mxu0 0
        %482 = vmatpush1.bf16.msra.mxu0 0
        %483 = vmatprep.subr.bf16.mxu0 0
        %484 = vmatpush1.bf16.msra.mxu0 0
        %485 = vmatprep.subr.bf16.mxu0 0
        %486 = vmatpush1.bf16.msra.mxu0 0
        %487 = vmatprep.mubr.bf16.mxu0 0
        %488 = vmatmul.mubr.bf16.gmra.mrb[0].mxu0 %v382
        %v489 = vpop.f32.mrb[0].mxu0
        %v490 = vadd.f32 %v405, %v489
        %v491 = vpop.f32.mrb[0].mxu0
        %v492 = vpop.f32.mrb[0].mxu0
        %v493 = vadd.f32 %v405, %v492
        %v494 = vpop.f32.mrb[0].mxu0
        %495 = vmatprep.mubr.bf16.mxu0 0
        %496 = vmatmul.mubr.bf16.gmra.mrb[0].mxu0 %v383
        %v497 = vpop.f32.mrb[0].mxu0
        %v498 = vadd.f32 %v405, %v497
        %v499 = vpop.f32.mrb[0].mxu0
        %v500 = vpop.f32.mrb[0].mxu0
        %v501 = vadd.f32 %v405, %v500
        %v502 = vpop.f32.mrb[0].mxu0
        %503 = vdwg.mxu0
        %v504 = vmax.f32 %v490, 0.0
        %v505 = vmax.f32 %v493, 0.0
        %v506 = vmax.f32 %v498, 0.0
        %v507 = vmax.f32 %v501, 0.0
        %v508 = vpack.c.bf16 %v505, %v504
        %v509 = vpack.c.bf16 %v507, %v506
        %v510 = vld [vmem:[%s5] sm:$0xf]
        %v511 = vld [vmem:[%s5 + $0x4] sm:$0xf]
        %v512 = vld [vmem:[%s5 + $0x8] sm:$0xf]
        %v513 = vld [vmem:[%s5 + $0xc] sm:$0xf]
        %v514 = vld [vmem:[%s5 + $0x10] sm:$0xf]
        %v515 = vld [vmem:[%s5 + $0x14] sm:$0xf]
        %v516 = vld [vmem:[%s5 + $0x18] sm:$0xf]
        %v517 = vld [vmem:[%s5 + $0x1c] sm:$0xf]
        %v518 = vld [vmem:[%s5 + $0x20] sm:$0xf]
        %v519 = vld [vmem:[%s5 + $0x24] sm:$0xf]
        %v520 = vld [vmem:[%s5 + $0x28] sm:$0xf]
        %v521 = vld [vmem:[%s5 + $0x2c] sm:$0xf]
        %v522 = vld [vmem:[%s5 + $0x30] sm:$0xf]
        %v523 = vld [vmem:[%s5 + $0x34] sm:$0xf]
        %v524 = vld [vmem:[%s5 + $0x38] sm:$0xf]
        %v525 = vld [vmem:[%s5 + $0x3c] sm:$0xf]
        %v526 = vld [vmem:[%s6] sm:$0x1]
        %v528 = vlaneseq
        %v529 = vshrl.u32 %v528, 7
        %v530 = vsub.s32 0, %v529
        %v531 = vrot.slane %v526, %v530
        %v549 = vunpack.c.l.b16 %v510
        %v550 = vunpack.c.l.b16 %v511
        %v551 = vunpack.c.l.b16 %v512
        %v552 = vunpack.c.l.b16 %v513
        %v553 = vunpack.c.l.b16 %v514
        %v554 = vunpack.c.l.b16 %v515
        %v555 = vunpack.c.l.b16 %v516
        %v556 = vunpack.c.l.b16 %v517
        %v557 = vunpack.c.l.b16 %v518
        %v558 = vunpack.c.l.b16 %v519
        %v559 = vunpack.c.l.b16 %v520
        %v560 = vunpack.c.l.b16 %v521
        %v561 = vunpack.c.l.b16 %v522
        %v562 = vunpack.c.l.b16 %v523
        %v563 = vunpack.c.l.b16 %v524
        %v564 = vunpack.c.l.b16 %v525
        %v565 = vpack.c.b16 %v550, %v549
        %v566 = vpack.c.b16 %v552, %v551
        %v567 = vpack.c.b16 %v554, %v553
        %v568 = vpack.c.b16 %v556, %v555
        %v569 = vpack.c.b16 %v558, %v557
        %v570 = vpack.c.b16 %v560, %v559
        %v571 = vpack.c.b16 %v562, %v561
        %v572 = vpack.c.b16 %v564, %v563
        %581 = vmatprep.subr.bf16.mxu0 0
        %582 = vmatpush1.bf16.msra.mxu0 %v565
        %583 = vmatprep.subr.bf16.mxu0 0
        %584 = vmatpush1.bf16.msra.mxu0 %v566
        %585 = vmatprep.subr.bf16.mxu0 0
        %586 = vmatpush1.bf16.msra.mxu0 %v567
        %587 = vmatprep.subr.bf16.mxu0 0
        %588 = vmatpush1.bf16.msra.mxu0 %v568
        %589 = vmatprep.subr.bf16.mxu0 0
        %590 = vmatpush1.bf16.msra.mxu0 %v569
        %591 = vmatprep.subr.bf16.mxu0 0
        %592 = vmatpush1.bf16.msra.mxu0 %v570
        %593 = vmatprep.subr.bf16.mxu0 0
        %594 = vmatpush1.bf16.msra.mxu0 %v571
        %595 = vmatprep.subr.bf16.mxu0 0
        %596 = vmatpush1.bf16.msra.mxu0 %v572
        %597 = vmatprep.subr.bf16.mxu0 0
        %598 = vmatpush1.bf16.msra.mxu0 0
        %599 = vmatprep.subr.bf16.mxu0 0
        %600 = vmatpush1.bf16.msra.mxu0 0
        %601 = vmatprep.subr.bf16.mxu0 0
        %602 = vmatpush1.bf16.msra.mxu0 0
        %603 = vmatprep.subr.bf16.mxu0 0
        %604 = vmatpush1.bf16.msra.mxu0 0
        %605 = vmatprep.subr.bf16.mxu0 0
        %606 = vmatpush1.bf16.msra.mxu0 0
        %607 = vmatprep.subr.bf16.mxu0 0
        %608 = vmatpush1.bf16.msra.mxu0 0
        %609 = vmatprep.subr.bf16.mxu0 0
        %610 = vmatpush1.bf16.msra.mxu0 0
        %611 = vmatprep.subr.bf16.mxu0 0
        %612 = vmatpush1.bf16.msra.mxu0 0
        %613 = vmatprep.mubr.bf16.mxu0 0
        %614 = vmatmul.mubr.bf16.gmra.mrb[0].mxu0 %v508
        %v615 = vpop.f32.mrb[0].mxu0
        %v616 = vadd.f32 %v531, %v615
        %v617 = vpop.f32.mrb[0].mxu0
        %v618 = vpop.f32.mrb[0].mxu0
        %v619 = vadd.f32 %v531, %v618
        %v620 = vpop.f32.mrb[0].mxu0
        %621 = vmatprep.mubr.bf16.mxu0 0
        %622 = vmatmul.mubr.bf16.gmra.mrb[0].mxu0 %v509
        %v623 = vpop.f32.mrb[0].mxu0
        %v624 = vadd.f32 %v531, %v623
        %v625 = vpop.f32.mrb[0].mxu0
        %v626 = vpop.f32.mrb[0].mxu0
        %v627 = vadd.f32 %v531, %v626
        %v628 = vpop.f32.mrb[0].mxu0
        %629 = vdwg.mxu0
        %v630 = vtanh.pop %v616
        %v631 = vtanh.pop %v619
        %v632 = vtanh.pop %v624
        %v633 = vtanh.pop %v627
        %v634 = vpack.c.bf16 %v631, %v630
        %v635 = vpack.c.bf16 %v633, %v632
        %v638 = vunpack.c.l.b16 %v634
        %v639 = vunpack.c.h.b16 %v634
        %v640 = vunpack.c.l.b16 %v635
        %v641 = vunpack.c.h.b16 %v635
        %v642 = vpack.c.b16 %v638, %v638
        %v643 = vpack.c.b16 %v639, %v639
        %v644 = vpack.c.b16 %v640, %v640
        %v645 = vpack.c.b16 %v641, %v641
        %vm650 = vcmask 60416
        %651 = vst.msk [vmem:[%s280] sm:$0xf] %vm650, %v642
        %652 = vst.msk [vmem:[%s280 + $0x4] sm:$0xf] %vm650, %v643
        %653 = vst.msk [vmem:[%s280 + $0x8] sm:$0xf] %vm650, %v644
        %654 = vst.msk [vmem:[%s280 + $0xc] sm:$0xf] %vm650, %v645
        %s655 = sand.u32 %s178, 1
        %s656 = sand.u32 %s178, 1
        %s657 = smul.addr %s656, 16
        %s658 = scalar_lea.vmem [#allocation2], %s657
        // Predicated region
        $region49: #{tpu_custom_call.1} parent=47 // pred_check
          %p659 = pneg %p188
        $region50: #{tpu_custom_call.1} parent=47 // pred_check_branch
          %661 = sbr.rel (%p659) target = $region52
        $region51: #{tpu_custom_call.1} parent=47 // pred_region
          %s662 = smul.u32 4, %s18
          %s663 = ssub.s32 9, %s662
          %p664 = scmp.lt.s32.totalorder %s663, 4
          %s665 = scalar_select %p664, %s663, 4
          %s666 = smul.u32 64, %s665
          %p667 = scmp.ne.s32.totalorder 0, %s666
          %s668 = smul.addr %s662, 4
          %s669 = scalar_lea.vmem %s7, %s668
          // Predicated region
          $region53: #{tpu_custom_call.1} parent=51 // pred_check
            %p670 = pneg %p667
          $region54: #{tpu_custom_call.1} parent=51 // pred_check_branch
            %672 = sbr.rel (%p670) target = $region56
          $region55: #{tpu_custom_call.1} parent=51 // pred_region
            // Predicated region
            $region57: #{tpu_custom_call.1} parent=55 // pred_check
              _
            $region58: #{tpu_custom_call.1} parent=55 // pred_check_branch
              %674 = sbr.rel target = $region60
            $region59: #{tpu_custom_call.1} parent=55 // pred_region
              // Predicated region
              $region79: #{tpu_custom_call.1} parent=59 // pred_check
                _
              $region80: #{tpu_custom_call.1} parent=59 // pred_check_branch
                %729 = sbr.rel (0) target = $region82
              $region81: #{tpu_custom_call.1} parent=59 // pred_region
                %s731 = sshrl.u32 %s665, 2
                // While loop
                $region83: #{tpu_custom_call.1} parent=81 // loop_pre_header
                  _
                $region84: #{tpu_custom_call.1} parent=81 // loop_header
                  %s733 = sphi 0, %s735
                  %p734 = scmp.ge.s32.totalorder %s733, %s731
                  %s738 = sphi 0, %s751
                  %s739 = sphi %s658, %s754
                  %s740 = sphi %s669, %s755
                $region85: #{tpu_custom_call.1} parent=81 // loop_header_branch
                  %737 = sbr.rel (%p734) target = $region89
                $region86: #{tpu_custom_call.1} parent=81 // loop_body
                  %v741 = vld [vmem:[%s739] sm:$0xf]
                  %742 = vst [vmem:[%s740] sm:$0xf] %v741
                  %v743 = vld [vmem:[%s739 + $0x4] sm:$0xf]
                  %744 = vst [vmem:[%s740 + $0x4] sm:$0xf] %v743
                  %v745 = vld [vmem:[%s739 + $0x8] sm:$0xf]
                  %746 = vst [vmem:[%s740 + $0x8] sm:$0xf] %v745
                  %v747 = vld [vmem:[%s739 + $0xc] sm:$0xf]
                  %748 = vst [vmem:[%s740 + $0xc] sm:$0xf] %v747
                  %s749 = sadd.s32 1, %s738
                  %p750 = scmp.ge.s32.totalorder %s749, %s731
                  %s751 = scalar_select %p750, 0, %s749
                  %s752 = smul.u32 %s751, 16
                  %s753 = smul.u32 %s751, 16
                  %s754 = scalar_lea.vmem %s658, %s752 [#allocation2]
                  %s755 = scalar_lea.vmem %s669, %s753
                $region87: #{tpu_custom_call.1} parent=81 // loop_footer
                  %s735 = sadd.s32 %s733, 1
                $region88: #{tpu_custom_call.1} parent=81 // loop_footer_branch
                  %732 = sbr.rel target = $region84
                $region89: #{tpu_custom_call.1} parent=81 // loop_exit
                  _
                %s756 = sshrl.u32 %s665, 2
                %s757 = sand.u32 %s665, 3
                %s758 = smul.u32 %s756, 4
                %s759 = smul.u32 4, %s758
                %s760 = scalar_lea.vmem %s658, %s759 [#allocation2]
                %s761 = smul.u32 4, %s758
                %s762 = scalar_lea.vmem %s669, %s761
                // While loop
                $region90: #{tpu_custom_call.1} parent=81 // loop_pre_header
                  _
                $region91: #{tpu_custom_call.1} parent=81 // loop_header
                  %s764 = sphi 0, %s766
                  %p765 = scmp.ge.s32.totalorder %s764, %s757
                  %s769 = sphi 0, %s776
                  %s770 = sphi %s760, %s779
                  %s771 = sphi %s762, %s780
                $region92: #{tpu_custom_call.1} parent=81 // loop_header_branch
                  %768 = sbr.rel (%p765) target = $region96
                $region93: #{tpu_custom_call.1} parent=81 // loop_body
                  %v772 = vld [vmem:[%s770] sm:$0xf]
                  %773 = vst [vmem:[%s771] sm:$0xf] %v772
                  %s774 = sadd.s32 1, %s769
                  %p775 = scmp.ge.s32.totalorder %s774, %s757
                  %s776 = scalar_select %p775, 0, %s774
                  %s777 = smul.u32 %s776, 4
                  %s778 = smul.u32 %s776, 4
                  %s779 = scalar_lea.vmem %s760, %s777 [#allocation2]
                  %s780 = scalar_lea.vmem %s762, %s778
                $region94: #{tpu_custom_call.1} parent=81 // loop_footer
                  %s766 = sadd.s32 %s764, 1
                $region95: #{tpu_custom_call.1} parent=81 // loop_footer_branch
                  %763 = sbr.rel target = $region91
                $region96: #{tpu_custom_call.1} parent=81 // loop_exit
                  _
              $region82: #{tpu_custom_call.1} parent=59 // pred_fallthru
                _
            $region60: #{tpu_custom_call.1} parent=55 // pred_fallthru
              _
            // Predicated region
            $region61: #{tpu_custom_call.1} parent=55 // pred_check
              _
            $region62: #{tpu_custom_call.1} parent=55 // pred_check_branch
              %676 = sbr.rel (0) target = $region64
            $region63: #{tpu_custom_call.1} parent=55 // pred_region
              %s678 = sshrl.u32 %s665, 2
              // While loop
              $region65: #{tpu_custom_call.1} parent=63 // loop_pre_header
                _
              $region66: #{tpu_custom_call.1} parent=63 // loop_header
                %s680 = sphi 0, %s682
                %p681 = scmp.ge.s32.totalorder %s680, %s678
                %s685 = sphi 0, %s698
                %s686 = sphi %s658, %s701
                %s687 = sphi %s669, %s702
              $region67: #{tpu_custom_call.1} parent=63 // loop_header_branch
                %684 = sbr.rel (%p681) target = $region71
              $region68: #{tpu_custom_call.1} parent=63 // loop_body
                %v688 = vld [vmem:[%s686] sm:$0xf]
                %689 = vst [vmem:[%s687] sm:$0xf] %v688
                %v690 = vld [vmem:[%s686 + $0x4] sm:$0xf]
                %691 = vst [vmem:[%s687 + $0x4] sm:$0xf] %v690
                %v692 = vld [vmem:[%s686 + $0x8] sm:$0xf]
                %693 = vst [vmem:[%s687 + $0x8] sm:$0xf] %v692
                %v694 = vld [vmem:[%s686 + $0xc] sm:$0xf]
                %695 = vst [vmem:[%s687 + $0xc] sm:$0xf] %v694
                %s696 = sadd.s32 1, %s685
                %p697 = scmp.ge.s32.totalorder %s696, %s678
                %s698 = scalar_select %p697, 0, %s696
                %s699 = smul.u32 %s698, 16
                %s700 = smul.u32 %s698, 16
                %s701 = scalar_lea.vmem %s658, %s699 [#allocation2]
                %s702 = scalar_lea.vmem %s669, %s700
              $region69: #{tpu_custom_call.1} parent=63 // loop_footer
                %s682 = sadd.s32 %s680, 1
              $region70: #{tpu_custom_call.1} parent=63 // loop_footer_branch
                %679 = sbr.rel target = $region66
              $region71: #{tpu_custom_call.1} parent=63 // loop_exit
                _
              %s703 = sshrl.u32 %s665, 2
              %s704 = sand.u32 %s665, 3
              %s705 = smul.u32 %s703, 4
              %s706 = smul.u32 4, %s705
              %s707 = scalar_lea.vmem %s658, %s706 [#allocation2]
              %s708 = smul.u32 4, %s705
              %s709 = scalar_lea.vmem %s669, %s708
              // While loop
              $region72: #{tpu_custom_call.1} parent=63 // loop_pre_header
                _
              $region73: #{tpu_custom_call.1} parent=63 // loop_header
                %s711 = sphi 0, %s713
                %p712 = scmp.ge.s32.totalorder %s711, %s704
                %s716 = sphi 0, %s723
                %s717 = sphi %s707, %s726
                %s718 = sphi %s709, %s727
              $region74: #{tpu_custom_call.1} parent=63 // loop_header_branch
                %715 = sbr.rel (%p712) target = $region78
              $region75: #{tpu_custom_call.1} parent=63 // loop_body
                %v719 = vld [vmem:[%s717] sm:$0xf]
                %720 = vst [vmem:[%s718] sm:$0xf] %v719
                %s721 = sadd.s32 1, %s716
                %p722 = scmp.ge.s32.totalorder %s721, %s704
                %s723 = scalar_select %p722, 0, %s721
                %s724 = smul.u32 %s723, 4
                %s725 = smul.u32 %s723, 4
                %s726 = scalar_lea.vmem %s707, %s724 [#allocation2]
                %s727 = scalar_lea.vmem %s709, %s725
              $region76: #{tpu_custom_call.1} parent=63 // loop_footer
                %s713 = sadd.s32 %s711, 1
              $region77: #{tpu_custom_call.1} parent=63 // loop_footer_branch
                %710 = sbr.rel target = $region73
              $region78: #{tpu_custom_call.1} parent=63 // loop_exit
                _
            $region64: #{tpu_custom_call.1} parent=55 // pred_fallthru
              _
          $region56: #{tpu_custom_call.1} parent=51 // pred_fallthru
            _
          %781 = vnop
        $region52: #{tpu_custom_call.1} parent=47 // pred_fallthru
          _
      $region48: #{tpu_custom_call.1} parent=5 // pred_fallthru
        _
      %p782 = scmp.le.s32.totalorder 2, %s13
      // Predicated region
      $region97: #{tpu_custom_call.1} parent=5 // pred_check
        %p783 = pneg %p782
      $region98: #{tpu_custom_call.1} parent=5 // pred_check_branch
        %785 = sbr.rel (%p783) target = $region100
      $region99: #{tpu_custom_call.1} parent=5 // pred_region
        %s786 = ssub.s32 %s13, 2
        // Predicated region
        $region101: #{tpu_custom_call.1} parent=99 // pred_check
          %p787 = pneg %p194
        $region102: #{tpu_custom_call.1} parent=99 // pred_check_branch
          %789 = sbr.rel (%p787) target = $region104
        $region103: #{tpu_custom_call.1} parent=99 // pred_region
          %s790 = sand.u32 %s179, 1
          %s791 = sand.u32 %s179, 1
          %s792 = smul.addr %s791, 16
          %s793 = scalar_lea.vmem [#allocation2], %s792
        $region104: #{tpu_custom_call.1} parent=99 // pred_fallthru
          _
      $region100: #{tpu_custom_call.1} parent=5 // pred_fallthru
        _
    $region6: #{tpu_custom_call.1} parent=1 // loop_footer
      %s17 = sadd.s32 1, %s13
    $region7: #{tpu_custom_call.1} parent=1 // loop_footer_branch
      %12 = sbr.rel target = $region3
    $region8: #{tpu_custom_call.1} parent=1 // loop_exit
      _

</llo_original>
